<compile_context>
chip_gen: v6e
topology: v6e:2x2x1
jax: 0.10.0
libtpu: 0.0.40
codegen_flags: <defaults>
</compile_context>

<pallas_src>
import jax
import jax.numpy as jnp
from jax.experimental import pallas as pl
from jax.experimental.pallas import tpu as pltpu

# ---------------- synthetic (small) config, consistent with the module ----------------
CLIP_PREFIX_SIZE = 64                                   # clip.visual.output_dim
GPT_EMBED_SIZE = 32                                     # gpt.transformer.wte.weight.shape[1]
NB_PREFIX_TOKENS = 10
HIDDEN_DIM = GPT_EMBED_SIZE * NB_PREFIX_TOKENS // 2     # MLP hidden  (= 160)
OUTPUT_DIM = GPT_EMBED_SIZE * NB_PREFIX_TOKENS          # MLP output  (= 320)
VOCAB = 128                                             # len(tokenizer) (synthetic)
EOS_TOKEN_ID = 50
MAX_LEN = 20
PATCH = 8
VIT_WIDTH = 48


def _vmem_specs(n):
    return [pl.BlockSpec(memory_space=pltpu.MemorySpace.VMEM) for _ in range(n)]


# ---------------------------------------------------------------------------
# Kernel 1 (fused): CLIP visual stub + clip_project MLP.
#   pooled  = mean over patches (mean commutes with the folded linear chain)
#   h       = tanh(pooled @ w1_fused + b1)     # w1_fused = W_embed @ W_proj @ W1^T
#   prompts = h @ W2^T + b2
# TODO(synk): the pretrained CLIP ViT transformer blocks are not reproduced;
#             only the patch-embed / pool / projection / MLP hot path is.
# ---------------------------------------------------------------------------
def _prefix_mlp_kernel(patches_ref, w1_ref, b1_ref, w2_ref, b2_ref, o_ref):
    # patches: [B, P, Dp]   w1: [Dp, H] bf16   w2: [H, O] bf16   out: [B, O] f32
    pooled = jnp.mean(patches_ref[...], axis=1)                          # [B, Dp]  (sublane reduce)
    h = jnp.dot(pooled.astype(jnp.bfloat16), w1_ref[...],
                preferred_element_type=jnp.float32) + b1_ref[...]        # MXU, f32 accum
    h = jnp.tanh(h)                                                      # EUP
    o_ref[...] = jnp.dot(h.astype(jnp.bfloat16), w2_ref[...],
                         preferred_element_type=jnp.float32) + b2_ref[...]


def clip_prefix(params, images):
    """clip.visual(images) -> clip_project(...)  as one fused pallas_call."""
    B, C, H, W = images.shape
    p = PATCH
    # patchify NCHW -> [B, P, C*p*p]  (layout plumbing only)
    # TODO(synk): at real image sizes fold this patchify into the kernel's DMA
    #             pattern (BlockSpec index_map) instead of a host-side transpose.
    x = images.reshape(B, C, H // p, p, W // p, p)
    x = x.transpose(0, 2, 4, 1, 3, 5).reshape(B, (H // p) * (W // p), C * p * p)
    return pl.pallas_call(
        _prefix_mlp_kernel,
        out_shape=jax.ShapeDtypeStruct((B, OUTPUT_DIM), jnp.float32),
        in_specs=_vmem_specs(5),
        out_specs=pl.BlockSpec(memory_space=pltpu.MemorySpace.VMEM),
    )(x, params["w1_fused"], params["b1"], params["w2_t"], params["b2"])


# ---------------------------------------------------------------------------
# Kernel 2: caption scoring — log_softmax, gather at generated indices,
# EOS mask, masked mean (exact math from ClipCapModel), vocab-tiled.
# ---------------------------------------------------------------------------
def _make_scoring_kernel(eos_id, temp, seq_len, v_tile, num_v_tiles):
    inv_temp = None if temp == 1.0 else 1.0 / temp    # fold / skip at trace time

    def kernel(idx_ref, logits_ref, o_ref, m_sc, l_sc, sel_sc):
        vi = pl.program_id(0)

        @pl.when(vi == 0)
        def _init():
            m_sc[...] = jnp.full(m_sc.shape, -jnp.inf, jnp.float32)
            l_sc[...] = jnp.zeros(l_sc.shape, jnp.float32)
            sel_sc[...] = jnp.zeros(sel_sc.shape, jnp.float32)

        logits = logits_ref[...]                                     # [B, T, Vt] f32
        if inv_temp is not None:
            logits = logits * inv_temp

        # --- online logsumexp over vocab tiles (running max / running sum) ---
        m_prev = m_sc[...]
        m_new = jnp.maximum(m_prev, jnp.max(logits, axis=-1))        # [B, T]
        alpha = jnp.exp(m_prev - m_new)
        l_sc[...] = alpha * l_sc[...] + jnp.sum(jnp.exp(logits - m_new[..., None]), axis=-1)
        m_sc[...] = m_new

        # --- gather the generated token's logit if it lives in this vocab tile ---
        idx = idx_ref[...]                                           # [B, T] int32
        local = idx - vi * v_tile
        iota_v = jax.lax.broadcasted_iota(jnp.int32, logits.shape, 2)
        hit = local[:, :, None] == iota_v                            # one-hot only per-tile
        sel_sc[...] += jnp.sum(jnp.where(hit, logits, 0.0), axis=-1)

        @pl.when(vi == num_v_tiles - 1)
        def _finalize():
            # gathered log_softmax value per (b, t)
            tok_lp = sel_sc[...] - (m_sc[...] + jnp.log(l_sc[...]))  # [B, T]
            # extra_tokens = cumsum(idx == eos) > 0  ==  (t >= first_eos_position)
            eos = idx == eos_id
            iota_t = jax.lax.broadcasted_iota(jnp.int32, idx.shape, 1)
            first_eos = jnp.min(jnp.where(eos, iota_t, seq_len), axis=1, keepdims=True)
            extra = (iota_t >= first_eos).astype(jnp.float32)
            mask = 1.0 - extra
            msg_len = jnp.float32(seq_len) - jnp.sum(extra, axis=1, keepdims=True)
            msg_len = jnp.maximum(msg_len, 1.0)      # guard EOS-at-pos-0 (0/0 in torch too)
            o_ref[...] = jnp.sum(tok_lp * mask, axis=1, keepdims=True) / msg_len

    return kernel


def caption_log_probs(logits, indices, eos_id=EOS_TOKEN_ID, temp=1.0):
    B, T, V = logits.shape
    v_tile = min(V, 128)
    assert V % v_tile == 0, "pad vocab to a multiple of 128"
    nv = V // v_tile
    out = pl.pallas_call(
        _make_scoring_kernel(eos_id, temp, T, v_tile, nv),
        out_shape=jax.ShapeDtypeStruct((B, 1), jnp.float32),
        grid=(nv,),
        in_specs=[
            pl.BlockSpec((B, T), lambda v: (0, 0)),                  # indices: VMEM-resident
            pl.BlockSpec((B, T, v_tile), lambda v: (0, 0, v)),       # logits: vocab-tiled DMA
        ],
        out_specs=pl.BlockSpec((B, 1), lambda v: (0, 0)),
        scratch_shapes=[pltpu.VMEM((B, T), jnp.float32)] * 3,        # m / l / selected-logit
        compiler_params=pltpu.CompilerParams(
            dimension_semantics=("arbitrary",)),                     # vocab axis is a reduction
    )(indices, logits)
    return out[:, 0]


# ---------------------------------------------------------------------------
# Parameter init (deterministic, in-script).  Linear prefix chain is folded
# here once (removes 2 matmuls + per-call weight transposes / bias reshapes).
# ---------------------------------------------------------------------------
def init_params(key):
    ks = jax.random.split(key, 4)
    patch_dim = 3 * PATCH * PATCH

    def init(k, shape, fan_in):
        return jax.random.normal(k, shape, jnp.float32) / jnp.sqrt(fan_in)

    # raw parameters (torch conventions: nn.Linear weight stored [out, in])
    w_embed = init(ks[0], (patch_dim, VIT_WIDTH), patch_dim)         # patch embedding
    w_proj = init(ks[1], (VIT_WIDTH, CLIP_PREFIX_SIZE), VIT_WIDTH)   # CLIP output proj
    mlp_w1 = init(ks[2], (HIDDEN_DIM, CLIP_PREFIX_SIZE), CLIP_PREFIX_SIZE)
    mlp_b1 = jnp.zeros((HIDDEN_DIM,), jnp.float32)
    mlp_w2 = init(ks[3], (OUTPUT_DIM, HIDDEN_DIM), HIDDEN_DIM)
    mlp_b2 = jnp.zeros((OUTPUT_DIM,), jnp.float32)

    # fold patch-embed -> mean-pool -> proj -> first Linear (all linear) into one
    # bf16 weight; mean-pool commutes so it stays in the kernel as a cheap reduce.
    w1_fused = (w_embed @ w_proj @ mlp_w1.T).astype(jnp.bfloat16)    # [Dp, HIDDEN]
    w2_t = mlp_w2.T.astype(jnp.bfloat16)                             # [HIDDEN, OUTPUT]
    return {
        "w1_fused": w1_fused,
        "b1": mlp_b1[None, :],      # already 2-D, kernel-ready
        "w2_t": w2_t,
        "b2": mlp_b2[None, :],
    }


# ---------------------------------------------------------------------------
# ClipCapSender.forward (non-MLE path):  clip.visual -> clip_project -> generate
# -> score generated captions.  Returns (captions, log_probs, kl_div, prompts).
# ---------------------------------------------------------------------------
def clipcap_sender_forward(params, images, key):
    B = images.shape[0]

    # 1+2) image_feats = clip.visual(images); prompts = clip_project(image_feats)
    #      -- fused into one pallas_call (linear chain folded at init).
    prompts = clip_prefix(params, images)
    prompts = prompts.reshape(B, NB_PREFIX_TOKENS, GPT_EMBED_SIZE)   # [B, 10, D]

    # 3) GPT-2 generation + forward producing logits over the suffix tokens.
    # TODO(synk): GPT2LMHeadModel.generate/forward and GPT2Tokenizer have no clean
    #             Pallas equivalent; substitute deterministic synthetic `indices`
    #             and `logits` with the exact shapes the module would produce.
    T = MAX_LEN - NB_PREFIX_TOKENS
    k1, k2, k3 = jax.random.split(key, 3)
    indices = jax.random.randint(k1, (B, T), 0, VOCAB, dtype=jnp.int32)
    indices = indices.at[:, T - 3].set(EOS_TOKEN_ID)                 # eos mid-caption
    logits = jax.random.normal(k2, (B, T, VOCAB), dtype=jnp.float32)

    # 4) log_softmax / gather / eos-mask / length-normalized sum  (Pallas kernel)
    log_probs = caption_log_probs(logits, indices, EOS_TOKEN_ID, temp=1.0)

    # 5) decoded_captions: tokenizer.batch_decode — untranslatable; return token ids.
    captions = indices
    kl_div = jax.random.normal(k3, (1,), dtype=jnp.float32)          # module: torch.randn(1)
    return captions, log_probs, kl_div, prompts


if __name__ == "__main__":
    key = jax.random.PRNGKey(0)
    kp, kx, kf = jax.random.split(key, 3)
    params = init_params(kp)
    images = jax.random.normal(kx, (2, 3, 16, 16), dtype=jnp.float32)  # NCHW, small
    captions, log_probs, kl_div, prompts = clipcap_sender_forward(params, images, kf)
    jax.block_until_ready((captions, log_probs, kl_div, prompts))
    assert captions.shape == (2, MAX_LEN - NB_PREFIX_TOKENS)
    assert log_probs.shape == (2,)
    assert prompts.shape == (2, NB_PREFIX_TOKENS, GPT_EMBED_SIZE)
    assert bool(jnp.all(jnp.isfinite(log_probs)))
    print("KERNEL_OK")
</pallas_src>

<mosaic_0001>
module attributes {stable_mosaic.version = 11 : i64} {
  func.func @_prefix_mlp_kernel(%arg0: memref<2x4x192xf32, #tpu.memory_space<vmem>>, %arg1: memref<192x160xbf16, #tpu.memory_space<vmem>>, %arg2: memref<1x160xf32, #tpu.memory_space<vmem>>, %arg3: memref<160x320xbf16, #tpu.memory_space<vmem>>, %arg4: memref<1x320xf32, #tpu.memory_space<vmem>>, %arg5: memref<2x320xf32, #tpu.memory_space<vmem>>) attributes {dimension_semantics = [], scalar_prefetch = 0 : i64, scratch_operands = 0 : i64, tpu.core_type = #tpu.core_type<tc>} {
    %c0 = arith.constant 0 : index
    %c0_0 = arith.constant 0 : index
    %c0_1 = arith.constant 0 : index
    %0 = vector.load %arg0[%c0, %c0_0, %c0_1] : memref<2x4x192xf32, #tpu.memory_space<vmem>>, vector<2x4x192xf32>
    %cst = arith.constant dense<0.000000e+00> : vector<2x192xf32>
    %1 = vector.multi_reduction <add>, %0, %cst [1] : vector<2x4x192xf32> to vector<2x192xf32>
    %cst_2 = arith.constant 4.000000e+00 : f32
    %2 = vector.broadcast %cst_2 : f32 to vector<2x192xf32>
    %3 = arith.divf %1, %2 : vector<2x192xf32>
    %4 = arith.truncf %3 : vector<2x192xf32> to vector<2x192xbf16>
    %c0_3 = arith.constant 0 : index
    %c0_4 = arith.constant 0 : index
    %5 = vector.load %arg1[%c0_3, %c0_4] : memref<192x160xbf16, #tpu.memory_space<vmem>>, vector<192x160xbf16>
    %cst_5 = arith.constant dense<0.000000e+00> : vector<2x160xf32>
    %6 = tpu.matmul %4, %5, %cst_5 {dimension_numbers = #tpu.dot_dimension_numbers<[1], [0], [0], [1], [0, 0, 1, 1], [], []>} : vector<2x192xbf16>, vector<192x160xbf16>, vector<2x160xf32> -> vector<2x160xf32>
    %c0_6 = arith.constant 0 : index
    %c0_7 = arith.constant 0 : index
    %7 = vector.load %arg2[%c0_6, %c0_7] : memref<1x160xf32, #tpu.memory_space<vmem>>, vector<1x160xf32>
    %8 = vector.broadcast %7 : vector<1x160xf32> to vector<2x160xf32>
    %9 = arith.addf %6, %8 : vector<2x160xf32>
    %10 = math.tanh %9 : vector<2x160xf32>
    %11 = arith.truncf %10 : vector<2x160xf32> to vector<2x160xbf16>
    %c0_8 = arith.constant 0 : index
    %c0_9 = arith.constant 0 : index
    %12 = vector.load %arg3[%c0_8, %c0_9] : memref<160x320xbf16, #tpu.memory_space<vmem>>, vector<160x320xbf16>
    %cst_10 = arith.constant dense<0.000000e+00> : vector<2x320xf32>
    %13 = tpu.matmul %11, %12, %cst_10 {dimension_numbers = #tpu.dot_dimension_numbers<[1], [0], [0], [1], [0, 0, 1, 1], [], []>} : vector<2x160xbf16>, vector<160x320xbf16>, vector<2x320xf32> -> vector<2x320xf32>
    %c0_11 = arith.constant 0 : index
    %c0_12 = arith.constant 0 : index
    %14 = vector.load %arg4[%c0_11, %c0_12] : memref<1x320xf32, #tpu.memory_space<vmem>>, vector<1x320xf32>
    %15 = vector.broadcast %14 : vector<1x320xf32> to vector<2x320xf32>
    %16 = arith.addf %13, %15 : vector<2x320xf32>
    %c0_13 = arith.constant 0 : index
    %c0_14 = arith.constant 0 : index
    %17 = vector.load %arg5[%c0_13, %c0_14] : memref<2x320xf32, #tpu.memory_space<vmem>>, vector<2x320xf32>
    tpu.vector_store %arg5[%c0_13, %c0_14], %16 {strides = array<i32>} : memref<2x320xf32, #tpu.memory_space<vmem>>, vector<2x320xf32>,
    return
  }
}

</mosaic_0001>

<llo_original>
// kernel: tpu_custom_call.1
$region0: #{tpu_custom_call.1}
  #allocation0 [shape = 'u32[]', space=smem, size = 0x4, offset = 0x4, fixed_abs, tag = 'smem constant byte address 0x4 - core index']
  #allocation1 [shape = 'u32[144,128]{1,0:T(1,128)}', space=vmem, size = 0x12000, scoped, tag = 'internal scratch']
  %s0 = inlined_call_operand.vmem [shape: f32[2,4,192], index: 0, kind: input, shape index: {}]
  %s1 = inlined_call_operand.vmem [shape: bf16[192,160], index: 1, kind: input, shape index: {}]
  %s2 = inlined_call_operand.vmem [shape: f32[1,160], index: 2, kind: input, shape index: {}]
  %s3 = inlined_call_operand.vmem [shape: bf16[160,320], index: 3, kind: input, shape index: {}]
  %s4 = inlined_call_operand.vmem [shape: f32[1,320], index: 4, kind: input, shape index: {}]
  %s5 = inlined_call_operand.hbm [shape: f32[2,320], index: 5, kind: output, shape index: {}]
  %s6 = sld [smem:[#allocation0]]
  $region30: #{tpu_custom_call.1} parent=0
    _
  %s8 = ssub.s32 1, %s6
  %s9 = scalar_select 0, %s8, %s6
  $region1: #{tpu_custom_call.1} parent=0
    #allocation2 [shape = 'u8[3072]{0}', space=vmem, size = 0xc00, scoped, tag = 'output window, operand 0, single buffered']
    #allocation3 [shape = 's32[1]{0}', space=sflag, size = 0x4, scoped, tag = 'scoped memory for tpu_custom_call.1']
    %10 = vsyncpa [#allocation3], 0
    // Predicated region
    $region2: #{tpu_custom_call.1} parent=1 // pred_check
      _
    $region3: #{tpu_custom_call.1} parent=1 // pred_check_branch
      %12 = sbr.rel (0) target = $region5
    $region4: #{tpu_custom_call.1} parent=1 // pred_region
      _
    $region5: #{tpu_custom_call.1} parent=1 // pred_fallthru
      _
    // Predicated region
    $region6: #{tpu_custom_call.1} parent=1 // pred_check
      _
    $region7: #{tpu_custom_call.1} parent=1 // pred_check_branch
      %14 = sbr.rel (0) target = $region9
    $region8: #{tpu_custom_call.1} parent=1 // pred_region
      _
    $region9: #{tpu_custom_call.1} parent=1 // pred_fallthru
      _
    // Predicated region
    $region10: #{tpu_custom_call.1} parent=1 // pred_check
      _
    $region11: #{tpu_custom_call.1} parent=1 // pred_check_branch
      %16 = sbr.rel (0) target = $region13
    $region12: #{tpu_custom_call.1} parent=1 // pred_region
      _
    $region13: #{tpu_custom_call.1} parent=1 // pred_fallthru
      _
    // Predicated region
    $region14: #{tpu_custom_call.1} parent=1 // pred_check
      _
    $region15: #{tpu_custom_call.1} parent=1 // pred_check_branch
      %18 = sbr.rel (0) target = $region17
    $region16: #{tpu_custom_call.1} parent=1 // pred_region
      _
    $region17: #{tpu_custom_call.1} parent=1 // pred_fallthru
      _
    // Predicated region
    $region18: #{tpu_custom_call.1} parent=1 // pred_check
      _
    $region19: #{tpu_custom_call.1} parent=1 // pred_check_branch
      %20 = sbr.rel (0) target = $region21
    $region20: #{tpu_custom_call.1} parent=1 // pred_region
      _
    $region21: #{tpu_custom_call.1} parent=1 // pred_fallthru
      _
    %v22 = vld [vmem:[%s0] sm:$0xff]
    %v23 = vld [vmem:[%s0 + $0x8] sm:$0xff]
    %v26 = vcombine.high %v22, %v22
    %v27 = vcombine.high %v23, %v23
    %vm30 = vcmask 1043456
    %v31 = vsel %vm30, %v22, 0.0
    %v32 = vrot.slane %v31, 4
    %v33 = vadd.f32 %v31, %v32
    %v34 = vrot.slane %v33, 2
    %v35 = vadd.f32 %v33, %v34
    %v36 = vrot.slane %v35, 1
    %v37 = vadd.f32 %v35, %v36
    %vm38 = vcmask 519168
    %v39 = vsel %vm38, %v26, 0.0
    %v40 = vrot.slane %v39, 4
    %v41 = vadd.f32 %v39, %v40
    %v42 = vrot.slane %v41, 2
    %v43 = vadd.f32 %v41, %v42
    %v44 = vrot.slane %v43, 1
    %v45 = vadd.f32 %v43, %v44
    %v46 = vsel %vm30, %v23, 0.0
    %v47 = vrot.slane %v46, 4
    %v48 = vadd.f32 %v46, %v47
    %v49 = vrot.slane %v48, 2
    %v50 = vadd.f32 %v48, %v49
    %v51 = vrot.slane %v50, 1
    %v52 = vadd.f32 %v50, %v51
    %v53 = vsel %vm38, %v27, 0.0
    %v54 = vrot.slane %v53, 4
    %v55 = vadd.f32 %v53, %v54
    %v56 = vrot.slane %v55, 2
    %v57 = vadd.f32 %v55, %v56
    %v58 = vrot.slane %v57, 1
    %v59 = vadd.f32 %v57, %v58
    %v60 = vrcp.pop 4.0
    %v61 = vmul.f32 %v37, %v60
    %v62 = vmul.f32 %v45, %v60
    %v63 = vmul.f32 %v52, %v60
    %v64 = vmul.f32 %v59, %v60
    %v65 = vpack.c.bf16 %v61, %v61
    %v66 = vpack.c.bf16 %v62, %v62
    %v67 = vpack.c.bf16 %v63, %v63
    %v68 = vpack.c.bf16 %v64, %v64
    %v69 = vld [vmem:[%s1] sm:$0xff]
    %v70 = vld [vmem:[%s1 + $0x8] sm:$0xff]
    %v71 = vld [vmem:[%s1 + $0x10] sm:$0xff]
    %v72 = vld [vmem:[%s1 + $0x18] sm:$0xff]
    %v73 = vld [vmem:[%s1 + $0x20] sm:$0xff]
    %v74 = vld [vmem:[%s1 + $0x28] sm:$0xff]
    %v75 = vld [vmem:[%s1 + $0x30] sm:$0xff]
    %v76 = vld [vmem:[%s1 + $0x38] sm:$0xff]
    %v77 = vld [vmem:[%s1 + $0x40] sm:$0xff]
    %v78 = vld [vmem:[%s1 + $0x48] sm:$0xff]
    %v79 = vld [vmem:[%s1 + $0x50] sm:$0xff]
    %v80 = vld [vmem:[%s1 + $0x58] sm:$0xff]
    %v81 = vld [vmem:[%s1 + $0x60] sm:$0xff]
    %v82 = vld [vmem:[%s1 + $0x68] sm:$0xff]
    %v83 = vld [vmem:[%s1 + $0x70] sm:$0xff]
    %v84 = vld [vmem:[%s1 + $0x78] sm:$0xff]
    %v85 = vld [vmem:[%s1 + $0x80] sm:$0xff]
    %v86 = vld [vmem:[%s1 + $0x88] sm:$0xff]
    %v87 = vld [vmem:[%s1 + $0x90] sm:$0xff]
    %v88 = vld [vmem:[%s1 + $0x98] sm:$0xff]
    %v89 = vld [vmem:[%s1 + $0xa0] sm:$0xff]
    %v90 = vld [vmem:[%s1 + $0xa8] sm:$0xff]
    %v91 = vld [vmem:[%s1 + $0xb0] sm:$0xff]
    %v92 = vld [vmem:[%s1 + $0xb8] sm:$0xff]
    %v93 = vld [vmem:[%s2] sm:$0x3]
    %v95 = vlaneseq
    %v96 = vshrl.u32 %v95, 7
    %v97 = vsub.s32 0, %v96
    %v98 = vrot.slane %v93, %v97
    %v99 = vlaneseq
    %v100 = vshrl.u32 %v99, 7
    %v101 = vsub.s32 1, %v100
    %v102 = vrot.slane %v93, %v101
    %v109 = vunpack.c.l.b16 %v65
    %v110 = vunpack.c.l.b16 %v66
    %v111 = vunpack.c.l.b16 %v67
    %v112 = vunpack.c.l.b16 %v68
    %vm113 = vcmask 1041409
    %v114 = vsel %vm113, %v111, %v109
    %v115 = vsel %vm113, %v112, %v110
    %v116 = vpack.c.b16 %v114, %v114
    %v117 = vpack.c.b16 %v115, %v115
    %v143 = vunpack.c.l.b16 %v69
    %v144 = vunpack.c.h.b16 %v69
    %v145 = vunpack.c.l.b16 %v70
    %v146 = vunpack.c.h.b16 %v70
    %v147 = vunpack.c.l.b16 %v71
    %v148 = vunpack.c.h.b16 %v71
    %v149 = vunpack.c.l.b16 %v72
    %v150 = vunpack.c.h.b16 %v72
    %v151 = vunpack.c.l.b16 %v73
    %v152 = vunpack.c.h.b16 %v73
    %v153 = vunpack.c.l.b16 %v74
    %v154 = vunpack.c.h.b16 %v74
    %v155 = vunpack.c.l.b16 %v75
    %v156 = vunpack.c.h.b16 %v75
    %v157 = vunpack.c.l.b16 %v76
    %v158 = vunpack.c.h.b16 %v76
    %v159 = vunpack.c.l.b16 %v77
    %v160 = vunpack.c.h.b16 %v77
    %v161 = vunpack.c.l.b16 %v78
    %v162 = vunpack.c.h.b16 %v78
    %v163 = vunpack.c.l.b16 %v79
    %v164 = vunpack.c.h.b16 %v79
    %v165 = vunpack.c.l.b16 %v80
    %v166 = vunpack.c.h.b16 %v80
    %v167 = vunpack.c.l.b16 %v81
    %v168 = vunpack.c.h.b16 %v81
    %v169 = vunpack.c.l.b16 %v82
    %v170 = vunpack.c.h.b16 %v82
    %v171 = vunpack.c.l.b16 %v83
    %v172 = vunpack.c.h.b16 %v83
    %v173 = vunpack.c.l.b16 %v84
    %v174 = vunpack.c.h.b16 %v84
    %v175 = vunpack.c.l.b16 %v85
    %v176 = vunpack.c.h.b16 %v85
    %v177 = vunpack.c.l.b16 %v86
    %v178 = vunpack.c.h.b16 %v86
    %v179 = vunpack.c.l.b16 %v87
    %v180 = vunpack.c.h.b16 %v87
    %v181 = vunpack.c.l.b16 %v88
    %v182 = vunpack.c.h.b16 %v88
    %v183 = vunpack.c.l.b16 %v89
    %v184 = vunpack.c.h.b16 %v89
    %v185 = vunpack.c.l.b16 %v90
    %v186 = vunpack.c.h.b16 %v90
    %v187 = vunpack.c.l.b16 %v91
    %v188 = vunpack.c.h.b16 %v91
    %v189 = vunpack.c.l.b16 %v92
    %v190 = vunpack.c.h.b16 %v92
    %v191 = vpack.c.b16 %v145, %v143
    %v192 = vpack.c.b16 %v146, %v144
    %v193 = vpack.c.b16 %v149, %v147
    %v194 = vpack.c.b16 %v150, %v148
    %v195 = vpack.c.b16 %v153, %v151
    %v196 = vpack.c.b16 %v154, %v152
    %v197 = vpack.c.b16 %v157, %v155
    %v198 = vpack.c.b16 %v158, %v156
    %v199 = vpack.c.b16 %v161, %v159
    %v200 = vpack.c.b16 %v162, %v160
    %v201 = vpack.c.b16 %v165, %v163
    %v202 = vpack.c.b16 %v166, %v164
    %v203 = vpack.c.b16 %v169, %v167
    %v204 = vpack.c.b16 %v170, %v168
    %v205 = vpack.c.b16 %v173, %v171
    %v206 = vpack.c.b16 %v174, %v172
    %v207 = vpack.c.b16 %v177, %v175
    %v208 = vpack.c.b16 %v178, %v176
    %v209 = vpack.c.b16 %v181, %v179
    %v210 = vpack.c.b16 %v182, %v180
    %v211 = vpack.c.b16 %v185, %v183
    %v212 = vpack.c.b16 %v186, %v184
    %v213 = vpack.c.b16 %v189, %v187
    %v214 = vpack.c.b16 %v190, %v188
    %vm239 = vcmask 523264
    %v241 = vsel %vm239, %v117, 0
    %243 = vmatprep.subr.bf16.mxu0 %v206
    %244 = vmatpush1.bf16.msra.mxu0 %v205
    %245 = vmatprep.subr.bf16.mxu0 %v204
    %246 = vmatpush1.bf16.msra.mxu0 %v203
    %247 = vmatprep.subr.bf16.mxu0 %v202
    %248 = vmatpush1.bf16.msra.mxu0 %v201
    %249 = vmatprep.subr.bf16.mxu0 %v200
    %250 = vmatpush1.bf16.msra.mxu0 %v199
    %251 = vmatprep.subr.bf16.mxu0 %v198
    %252 = vmatpush1.bf16.msra.mxu0 %v197
    %253 = vmatprep.subr.bf16.mxu0 %v196
    %254 = vmatpush1.bf16.msra.mxu0 %v195
    %255 = vmatprep.subr.bf16.mxu0 %v194
    %256 = vmatpush1.bf16.msra.mxu0 %v193
    %257 = vmatprep.subr.bf16.mxu0 %v192
    %258 = vmatpush1.bf16.msra.mxu0 %v191
    %259 = vmatprep.subr.bf16.mxu0 0
    %260 = vmatpush2.bf16.msra.mxu0 0
    %261 = vmatprep.subr.bf16.mxu0 0
    %262 = vmatpush2.bf16.msra.mxu0 0
    %263 = vmatprep.subr.bf16.mxu0 0
    %264 = vmatpush2.bf16.msra.mxu0 0
    %265 = vmatprep.subr.bf16.mxu0 0
    %266 = vmatpush2.bf16.msra.mxu0 0
    %267 = vmatprep.subr.bf16.mxu0 %v214
    %268 = vmatpush2.bf16.msra.mxu0 %v213
    %269 = vmatprep.subr.bf16.mxu0 %v212
    %270 = vmatpush2.bf16.msra.mxu0 %v211
    %271 = vmatprep.subr.bf16.mxu0 %v210
    %272 = vmatpush2.bf16.msra.mxu0 %v209
    %273 = vmatprep.subr.bf16.mxu0 %v208
    %274 = vmatpush2.bf16.msra.mxu0 %v207
    %275 = vmatprep.mubr.bf16.mxu0 %v241
    %276 = vmatmul.mubr.bf16.gmra.mxu0 %v116
    %v277 = vpop.f32.mrf.mxu0
    %v278 = vadd.f32 %v98, %v277
    %v279 = vpop.f32.mrf.mxu0
    %v280 = vadd.f32 %v102, %v279
    %v281 = vpop.f32.mrf.mxu0
    %v282 = vpop.f32.mrf.mxu0
    %283 = vdwg.mxu0
    %v284 = vtanh.pop %v278
    %v285 = vtanh.pop %v280
    %v286 = vpack.c.bf16 %v284, %v284
    %v287 = vpack.c.bf16 %v285, %v285
    %v288 = vld [vmem:[%s3] sm:$0xff]
    %v289 = vld [vmem:[%s3 + $0x8] sm:$0xf]
    %v290 = vld [vmem:[%s3 + $0xc] sm:$0xff]
    %v291 = vld [vmem:[%s3 + $0x14] sm:$0xf]
    %v292 = vld [vmem:[%s3 + $0x18] sm:$0xff]
    %v293 = vld [vmem:[%s3 + $0x20] sm:$0xf]
    %v294 = vld [vmem:[%s3 + $0x24] sm:$0xff]
    %v295 = vld [vmem:[%s3 + $0x2c] sm:$0xf]
    %v296 = vld [vmem:[%s3 + $0x30] sm:$0xff]
    %v297 = vld [vmem:[%s3 + $0x38] sm:$0xf]
    %v298 = vld [vmem:[%s3 + $0x3c] sm:$0xff]
    %v299 = vld [vmem:[%s3 + $0x44] sm:$0xf]
    %v300 = vld [vmem:[%s3 + $0x48] sm:$0xff]
    %v301 = vld [vmem:[%s3 + $0x50] sm:$0xf]
    %v302 = vld [vmem:[%s3 + $0x54] sm:$0xff]
    %v303 = vld [vmem:[%s3 + $0x5c] sm:$0xf]
    %v304 = vld [vmem:[%s3 + $0x60] sm:$0xff]
    %v305 = vld [vmem:[%s3 + $0x68] sm:$0xf]
    %v306 = vld [vmem:[%s3 + $0x6c] sm:$0xff]
    %v307 = vld [vmem:[%s3 + $0x74] sm:$0xf]
    %v308 = vld [vmem:[%s3 + $0x78] sm:$0xff]
    %v309 = vld [vmem:[%s3 + $0x80] sm:$0xf]
    %v310 = vld [vmem:[%s3 + $0x84] sm:$0xff]
    %v311 = vld [vmem:[%s3 + $0x8c] sm:$0xf]
    %v312 = vld [vmem:[%s3 + $0x90] sm:$0xff]
    %v313 = vld [vmem:[%s3 + $0x98] sm:$0xf]
    %v314 = vld [vmem:[%s3 + $0x9c] sm:$0xff]
    %v315 = vld [vmem:[%s3 + $0xa4] sm:$0xf]
    %v316 = vld [vmem:[%s3 + $0xa8] sm:$0xff]
    %v317 = vld [vmem:[%s3 + $0xb0] sm:$0xf]
    %v318 = vld [vmem:[%s3 + $0xb4] sm:$0xff]
    %v319 = vld [vmem:[%s3 + $0xbc] sm:$0xf]
    %v320 = vld [vmem:[%s3 + $0xc0] sm:$0xff]
    %v321 = vld [vmem:[%s3 + $0xc8] sm:$0xf]
    %v322 = vld [vmem:[%s3 + $0xcc] sm:$0xff]
    %v323 = vld [vmem:[%s3 + $0xd4] sm:$0xf]
    %v324 = vld [vmem:[%s3 + $0xd8] sm:$0xff]
    %v325 = vld [vmem:[%s3 + $0xe0] sm:$0xf]
    %v326 = vld [vmem:[%s3 + $0xe4] sm:$0xff]
    %v327 = vld [vmem:[%s3 + $0xec] sm:$0xf]
    %v328 = vld [vmem:[%s4] sm:$0x7]
    %v330 = vlaneseq
    %v331 = vshrl.u32 %v330, 7
    %v332 = vsub.s32 0, %v331
    %v333 = vrot.slane %v328, %v332
    %v334 = vlaneseq
    %v335 = vshrl.u32 %v334, 7
    %v336 = vsub.s32 1, %v335
    %v337 = vrot.slane %v328, %v336
    %v338 = vlaneseq
    %v339 = vshrl.u32 %v338, 7
    %v340 = vsub.s32 2, %v339
    %v341 = vrot.slane %v328, %v340
    %v385 = vunpack.c.l.b16 %v288
    %v386 = vunpack.c.h.b16 %v288
    %v387 = vunpack.c.l.b16 %v289
    %v388 = vunpack.c.l.b16 %v290
    %v389 = vunpack.c.h.b16 %v290
    %v390 = vunpack.c.l.b16 %v291
    %v391 = vunpack.c.l.b16 %v292
    %v392 = vunpack.c.h.b16 %v292
    %v393 = vunpack.c.l.b16 %v293
    %v394 = vunpack.c.l.b16 %v294
    %v395 = vunpack.c.h.b16 %v294
    %v396 = vunpack.c.l.b16 %v295
    %v397 = vunpack.c.l.b16 %v296
    %v398 = vunpack.c.h.b16 %v296
    %v399 = vunpack.c.l.b16 %v297
    %v400 = vunpack.c.l.b16 %v298
    %v401 = vunpack.c.h.b16 %v298
    %v402 = vunpack.c.l.b16 %v299
    %v403 = vunpack.c.l.b16 %v300
    %v404 = vunpack.c.h.b16 %v300
    %v405 = vunpack.c.l.b16 %v301
    %v406 = vunpack.c.l.b16 %v302
    %v407 = vunpack.c.h.b16 %v302
    %v408 = vunpack.c.l.b16 %v303
    %v409 = vunpack.c.l.b16 %v304
    %v410 = vunpack.c.h.b16 %v304
    %v411 = vunpack.c.l.b16 %v305
    %v412 = vunpack.c.l.b16 %v306
    %v413 = vunpack.c.h.b16 %v306
    %v414 = vunpack.c.l.b16 %v307
    %v415 = vunpack.c.l.b16 %v308
    %v416 = vunpack.c.h.b16 %v308
    %v417 = vunpack.c.l.b16 %v309
    %v418 = vunpack.c.l.b16 %v310
    %v419 = vunpack.c.h.b16 %v310
    %v420 = vunpack.c.l.b16 %v311
    %v421 = vunpack.c.l.b16 %v312
    %v422 = vunpack.c.h.b16 %v312
    %v423 = vunpack.c.l.b16 %v313
    %v424 = vunpack.c.l.b16 %v314
    %v425 = vunpack.c.h.b16 %v314
    %v426 = vunpack.c.l.b16 %v315
    %v427 = vunpack.c.l.b16 %v316
    %v428 = vunpack.c.h.b16 %v316
    %v429 = vunpack.c.l.b16 %v317
    %v430 = vunpack.c.l.b16 %v318
    %v431 = vunpack.c.h.b16 %v318
    %v432 = vunpack.c.l.b16 %v319
    %v433 = vunpack.c.l.b16 %v320
    %v434 = vunpack.c.h.b16 %v320
    %v435 = vunpack.c.l.b16 %v321
    %v436 = vunpack.c.l.b16 %v322
    %v437 = vunpack.c.h.b16 %v322
    %v438 = vunpack.c.l.b16 %v323
    %v439 = vunpack.c.l.b16 %v324
    %v440 = vunpack.c.h.b16 %v324
    %v441 = vunpack.c.l.b16 %v325
    %v442 = vunpack.c.l.b16 %v326
    %v443 = vunpack.c.h.b16 %v326
    %v444 = vunpack.c.l.b16 %v327
    %v445 = vpack.c.b16 %v388, %v385
    %v446 = vpack.c.b16 %v389, %v386
    %v447 = vpack.c.b16 %v390, %v387
    %v448 = vpack.c.b16 %v394, %v391
    %v449 = vpack.c.b16 %v395, %v392
    %v450 = vpack.c.b16 %v396, %v393
    %v451 = vpack.c.b16 %v400, %v397
    %v452 = vpack.c.b16 %v401, %v398
    %v453 = vpack.c.b16 %v402, %v399
    %v454 = vpack.c.b16 %v406, %v403
    %v455 = vpack.c.b16 %v407, %v404
    %v456 = vpack.c.b16 %v408, %v405
    %v457 = vpack.c.b16 %v412, %v409
    %v458 = vpack.c.b16 %v413, %v410
    %v459 = vpack.c.b16 %v414, %v411
    %v460 = vpack.c.b16 %v418, %v415
    %v461 = vpack.c.b16 %v419, %v416
    %v462 = vpack.c.b16 %v420, %v417
    %v463 = vpack.c.b16 %v424, %v421
    %v464 = vpack.c.b16 %v425, %v422
    %v465 = vpack.c.b16 %v426, %v423
    %v466 = vpack.c.b16 %v430, %v427
    %v467 = vpack.c.b16 %v431, %v428
    %v468 = vpack.c.b16 %v432, %v429
    %v469 = vpack.c.b16 %v436, %v433
    %v470 = vpack.c.b16 %v437, %v434
    %v471 = vpack.c.b16 %v438, %v435
    %v472 = vpack.c.b16 %v442, %v439
    %v473 = vpack.c.b16 %v443, %v440
    %v474 = vpack.c.b16 %v444, %v441
    %vm505 = vcmask 261120
    %v507 = vsel %vm505, %v287, 0
    %509 = vmatprep.subr.bf16.mxu0 %v467
    %510 = vmatpush1.bf16.msra.mxu0 %v466
    %511 = vmatprep.subr.bf16.mxu0 %v464
    %512 = vmatpush1.bf16.msra.mxu0 %v463
    %513 = vmatprep.subr.bf16.mxu0 %v461
    %514 = vmatpush1.bf16.msra.mxu0 %v460
    %515 = vmatprep.subr.bf16.mxu0 %v458
    %516 = vmatpush1.bf16.msra.mxu0 %v457
    %517 = vmatprep.subr.bf16.mxu0 %v455
    %518 = vmatpush1.bf16.msra.mxu0 %v454
    %519 = vmatprep.subr.bf16.mxu0 %v452
    %520 = vmatpush1.bf16.msra.mxu0 %v451
    %521 = vmatprep.subr.bf16.mxu0 %v449
    %522 = vmatpush1.bf16.msra.mxu0 %v448
    %523 = vmatprep.subr.bf16.mxu0 %v446
    %524 = vmatpush1.bf16.msra.mxu0 %v445
    %525 = vmatprep.subr.bf16.mxu0 0
    %526 = vmatpush2.bf16.msra.mxu0 0
    %527 = vmatprep.subr.bf16.mxu0 0
    %528 = vmatpush2.bf16.msra.mxu0 0
    %529 = vmatprep.subr.bf16.mxu0 0
    %530 = vmatpush2.bf16.msra.mxu0 0
    %531 = vmatprep.subr.bf16.mxu0 0
    %532 = vmatpush2.bf16.msra.mxu0 0
    %533 = vmatprep.subr.bf16.mxu0 0
    %534 = vmatpush2.bf16.msra.mxu0 0
    %535 = vmatprep.subr.bf16.mxu0 0
    %536 = vmatpush2.bf16.msra.mxu0 0
    %537 = vmatprep.subr.bf16.mxu0 %v473
    %538 = vmatpush2.bf16.msra.mxu0 %v472
    %539 = vmatprep.subr.bf16.mxu0 %v470
    %540 = vmatpush2.bf16.msra.mxu0 %v469
    %541 = vmatprep.mubr.bf16.mxu0 %v507
    %542 = vmatmul.mubr.bf16.gmra.mxu0 %v286
    %v543 = vpop.f32.mrf.mxu0
    %v544 = vadd.f32 %v333, %v543
    %v545 = vpop.f32.mrf.mxu0
    %v546 = vadd.f32 %v337, %v545
    %v547 = vpop.f32.mrf.mxu0
    %v548 = vpop.f32.mrf.mxu0
    %549 = vdwg.mxu0
    %550 = vmatprep.subr.bf16.mxu0 0
    %551 = vmatpush1.bf16.msra.mxu0 %v468
    %552 = vmatprep.subr.bf16.mxu0 0
    %553 = vmatpush1.bf16.msra.mxu0 %v465
    %554 = vmatprep.subr.bf16.mxu0 0
    %555 = vmatpush1.bf16.msra.mxu0 %v462
    %556 = vmatprep.subr.bf16.mxu0 0
    %557 = vmatpush1.bf16.msra.mxu0 %v459
    %558 = vmatprep.subr.bf16.mxu0 0
    %559 = vmatpush1.bf16.msra.mxu0 %v456
    %560 = vmatprep.subr.bf16.mxu0 0
    %561 = vmatpush1.bf16.msra.mxu0 %v453
    %562 = vmatprep.subr.bf16.mxu0 0
    %563 = vmatpush1.bf16.msra.mxu0 %v450
    %564 = vmatprep.subr.bf16.mxu0 0
    %565 = vmatpush1.bf16.msra.mxu0 %v447
    %566 = vmatprep.subr.bf16.mxu0 0
    %567 = vmatpush2.bf16.msra.mxu0 0
    %568 = vmatprep.subr.bf16.mxu0 0
    %569 = vmatpush2.bf16.msra.mxu0 0
    %570 = vmatprep.subr.bf16.mxu0 0
    %571 = vmatpush2.bf16.msra.mxu0 0
    %572 = vmatprep.subr.bf16.mxu0 0
    %573 = vmatpush2.bf16.msra.mxu0 0
    %574 = vmatprep.subr.bf16.mxu0 0
    %575 = vmatpush2.bf16.msra.mxu0 0
    %576 = vmatprep.subr.bf16.mxu0 0
    %577 = vmatpush2.bf16.msra.mxu0 0
    %578 = vmatprep.subr.bf16.mxu0 0
    %579 = vmatpush2.bf16.msra.mxu0 %v474
    %580 = vmatprep.subr.bf16.mxu0 0
    %581 = vmatpush2.bf16.msra.mxu0 %v471
    %582 = vmatprep.mubr.bf16.mxu0 %v507
    %583 = vmatmul.mubr.bf16.gmra.mxu0 %v286
    %v584 = vpop.f32.mrf.mxu0
    %v585 = vadd.f32 %v341, %v584
    %v586 = vpop.f32.mrf.mxu0
    %v587 = vpop.f32.mrf.mxu0
    %v588 = vpop.f32.mrf.mxu0
    %589 = vdwg.mxu0
    %v593 = vcombine.low %v544, %v546
    %v595 = vunpack.c.l.s4 1983009808
    %v596 = vunpack.c.0.s8 %v595
    %v597 = vlaneseq
    %v598 = vshrl.u32 %v597, 7
    %v599 = vsub.s32 %v596, %v598
    %v600 = vrot.slane %v593, %v599
    %v602 = vunpack.c.l.s4 1983009808
    %v603 = vunpack.c.0.s8 %v602
    %v604 = vlaneseq
    %v605 = vshrl.u32 %v604, 7
    %v606 = vsub.s32 %v603, %v605
    %v607 = vrot.slane %v585, %v606
    %v608 = vcombine.low %v600, %v607
    %vm610 = vcmask 1041408
    %vm611 = vcmask 1043458
    %vm612 = vmor %vm611, %vm610
    %vm613 = vcmask 521220
    %vm614 = vmor %vm613, %vm612
    %615 = vst.msk [vmem:[#allocation2] sm:$0x3f] %vm614, %v608
    // Predicated region
    $region22: #{tpu_custom_call.1} parent=1 // pred_check
      _
    $region23: #{tpu_custom_call.1} parent=1 // pred_check_branch
      %617 = sbr.rel (0) target = $region25
    $region24: #{tpu_custom_call.1} parent=1 // pred_region
      %s619 = ssub.s32 96, 96
      %620 = vsyncadd [#allocation3], %s619
      %s622 = sshll.u32 [#allocation2], 4
      %s623 = int_to_ptr.vmem [resolvable:$true] %s622
      %625 = dma.vmem_to_hbm [thread:$0]  %s623, 96, %s5, [#allocation3]
    $region25: #{tpu_custom_call.1} parent=1 // pred_fallthru
      _
    // Predicated region
    $region26: #{tpu_custom_call.1} parent=1 // pred_check
      _
    $region27: #{tpu_custom_call.1} parent=1 // pred_check_branch
      %627 = sbr.rel (0) target = $region29
    $region28: #{tpu_custom_call.1} parent=1 // pred_region
      %628 = dma.done [#allocation3], 96
    $region29: #{tpu_custom_call.1} parent=1 // pred_fallthru
      _
    %629 = vsyncpa [#allocation3], 1

</llo_original>
